<compile_context>
chip_gen: v7x
topology: tpu7x:2x2x1
jax: 0.10.0
libtpu: 0.0.40
codegen_flags: <defaults>
</compile_context>

<pallas_src>
import functools

import jax
import jax.numpy as jnp
from jax.experimental import pallas as pl
from jax.experimental.pallas import tpu as pltpu

EPS = 1e-5          # nn.InstanceNorm2d default eps
NEG_SLOPE = 0.2     # LeakyReLU(0.2)
LANE = 128


def _round_up(x, m):
    return (x + m - 1) // m * m


def _pick_th(hout, wout, target_rows=512):
    """Largest divisor of hout with ~target_rows output rows per tile."""
    th = max(1, min(hout, max(1, target_rows // max(wout, 1))))
    while hout % th != 0:
        th -= 1
    return th


def _unet_down_kernel(a_ref, b_ref, w_ref, o_ref, sum_ref, ssq_ref, *,
                      th, wout, cout_pad, n_row_tiles):
    # a_ref: (1, TH, Wout+1, 4C)   current row-tile of the space-to-depth input
    # b_ref: (1, 1,  Wout+1, 4C)   the one extra row needed for the k=4 overlap
    # w_ref: (2, 2, 4C, Cout_pad)  weight pieces per (row-offset, col-offset)
    # o_ref: (1, P, Cout_pad)      per-sample output, resident across row tiles
    j = pl.program_id(1)
    tile_rows = th * wout

    @pl.when(j == 0)
    def _init():
        sum_ref[...] = jnp.zeros_like(sum_ref)
        ssq_ref[...] = jnp.zeros_like(ssq_ref)

    # (TH + 1, Wout + 1, 4C) rows needed by this tile of output rows.
    rows = jnp.concatenate([a_ref[0], b_ref[0]], axis=0)

    # Conv2d(4, 2, 1, bias=False) == sum of 4 matmuls over the 2x2 sub-pixel
    # offsets of the space-to-depth input.  Accumulate in f32 (MXU output).
    acc = jnp.zeros((tile_rows, cout_pad), jnp.float32)
    for hg0 in range(2):
        for wg0 in range(2):
            piece = rows[hg0:hg0 + th, wg0:wg0 + wout, :]       # (TH, Wout, 4C)
            piece = piece.reshape(tile_rows, piece.shape[-1])   # (TH*Wout, 4C)
            acc = acc + jnp.dot(piece, w_ref[hg0, wg0],
                                preferred_element_type=jnp.float32)

    # Fused InstanceNorm statistics (f32 accumulators).
    sum_ref[...] += jnp.sum(acc, axis=0, keepdims=True)
    ssq_ref[...] += jnp.sum(acc * acc, axis=0, keepdims=True)

    start = j * tile_rows
    if tile_rows % 8 == 0:
        start = pl.multiple_of(start, 8)
    o_ref[0, pl.ds(start, tile_rows), :] = acc.astype(o_ref.dtype)

    # Last row tile: normalize the resident output block in place + LeakyReLU.
    @pl.when(j == n_row_tiles - 1)
    def _finalize():
        count = jnp.float32(n_row_tiles * tile_rows)
        mean = sum_ref[...] / count                             # (1, Cout_pad)
        var = jnp.maximum(ssq_ref[...] / count - mean * mean, 0.0)
        inv = jax.lax.rsqrt(var + EPS)

        def body(i, carry):
            s = i * tile_rows
            if tile_rows % 8 == 0:
                s = pl.multiple_of(s, 8)
            y = o_ref[0, pl.ds(s, tile_rows), :].astype(jnp.float32)
            yn = (y - mean) * inv
            o_ref[0, pl.ds(s, tile_rows), :] = jnp.where(
                yn >= 0, yn, NEG_SLOPE * yn).astype(o_ref.dtype)
            return carry

        jax.lax.fori_loop(0, n_row_tiles, body, 0)


def unet_down(x, weight):
    """x: (N, Cin, H, W) NCHW; weight: (Cout, Cin, 4, 4) PyTorch OIHW."""
    n, c, h, w = x.shape
    cout = weight.shape[0]
    assert h % 2 == 0 and w % 2 == 0, "UNetDown expects even H and W"
    hout, wout = h // 2, w // 2
    p = hout * wout
    wq = wout + 1
    cin4 = 4 * c
    cout_pad = _round_up(cout, LANE)
    th = _pick_th(hout, wout)
    n_row_tiles = hout // th

    # Cheap space-to-depth(2) of the zero-padded input: (N, Hout+1, Wout+1, 4C),
    # feature order (hp, wp, c) where padded (row, col) = (2*hg+hp, 2*wg+wp).
    xp = jnp.pad(x, ((0, 0), (0, 0), (1, 1), (1, 1)))
    xs = xp.reshape(n, c, hout + 1, 2, wq, 2)
    xs = jnp.transpose(xs, (0, 2, 4, 3, 5, 1)).reshape(n, hout + 1, wq, cin4)

    # Weight OIHW -> (hg0, wg0, (hp, wp, c), Cout_pad); kh=2*hg0+hp, kw=2*wg0+wp.
    wt = jnp.transpose(weight, (2, 3, 1, 0))                    # (kh, kw, C, Cout)
    wt = wt.reshape(2, 2, 2, 2, c, cout)                        # (hg0,hp,wg0,wp,C,Cout)
    wt = jnp.transpose(wt, (0, 2, 1, 3, 4, 5)).reshape(2, 2, cin4, cout)
    wt = jnp.pad(wt, ((0, 0), (0, 0), (0, 0), (0, cout_pad - cout)))
    wt = wt.astype(x.dtype)

    # VMEM budget -> explicit limit (double-buffered inputs + resident output).
    itemsize = jnp.dtype(x.dtype).itemsize
    est = (2 * th * wq * cin4 * itemsize          # a tile (double buffered)
           + 2 * wq * cin4 * itemsize             # b tile
           + 2 * 4 * cin4 * cout_pad * itemsize   # weight
           + 2 * p * cout_pad * itemsize          # resident output block
           + 2 * cout_pad * 4                     # stats scratch
           + 6 * th * wout * cout_pad * 4)        # accumulator / temporaries
    vmem_limit = int(min(64 * 2**20, max(16 * 2**20, est * 3 // 2)))

    kernel = functools.partial(_unet_down_kernel, th=th, wout=wout,
                               cout_pad=cout_pad, n_row_tiles=n_row_tiles)

    out = pl.pallas_call(
        kernel,
        out_shape=jax.ShapeDtypeStruct((n, p, cout_pad), x.dtype),
        grid_spec=pltpu.PrefetchScalarGridSpec(
            num_scalar_prefetch=0,
            grid=(n, n_row_tiles),
            in_specs=[
                # main TH-row tile of the space-to-depth input
                pl.BlockSpec((1, th, wq, cin4), lambda b, j: (b, j, 0, 0)),
                # the single extra row (k=4 window overlaps the next tile)
                pl.BlockSpec((1, 1, wq, cin4), lambda b, j: (b, (j + 1) * th, 0, 0)),
                # resident weight
                pl.BlockSpec((2, 2, cin4, cout_pad), lambda b, j: (0, 0, 0, 0)),
            ],
            out_specs=pl.BlockSpec((1, p, cout_pad), lambda b, j: (b, 0, 0)),
            scratch_shapes=[pltpu.VMEM((1, cout_pad), jnp.float32),
                            pltpu.VMEM((1, cout_pad), jnp.float32)],
        ),
        compiler_params=pltpu.CompilerParams(
            dimension_semantics=("parallel", "arbitrary"),
            vmem_limit_bytes=vmem_limit),
    )(xs, xs, wt)

    out = out[:, :, :cout].reshape(n, hout, wout, cout)
    return jnp.transpose(out, (0, 3, 1, 2))                     # back to NCHW


def unet_down_ref(x, weight):
    """Pure-JAX reference mirroring the PyTorch module semantics."""
    y = jax.lax.conv_general_dilated(
        x, weight, window_strides=(2, 2), padding=((1, 1), (1, 1)),
        dimension_numbers=("NCHW", "OIHW", "NCHW"))
    mean = jnp.mean(y, axis=(2, 3), keepdims=True)
    var = jnp.mean((y - mean) ** 2, axis=(2, 3), keepdims=True)
    yn = (y - mean) * jax.lax.rsqrt(var + EPS)
    return jnp.where(yn >= 0, yn, NEG_SLOPE * yn)


if __name__ == "__main__":
    key = jax.random.PRNGKey(0)
    kx, kw = jax.random.split(key)

    N, Cin, H, W = 2, 4, 16, 16
    Cout = 8
    x = jax.random.normal(kx, (N, Cin, H, W), dtype=jnp.float32)

    # Deterministic synthetic Conv2d weight (PyTorch-style uniform fan-in init)
    fan_in = Cin * 4 * 4
    bound = (1.0 / fan_in) ** 0.5
    weight = jax.random.uniform(kw, (Cout, Cin, 4, 4), dtype=jnp.float32,
                                minval=-bound, maxval=bound)

    out = unet_down(x, weight)
    jax.block_until_ready(out)

    ref = unet_down_ref(x, weight)
    assert out.shape == (N, Cout, H // 2, W // 2)
    err = float(jnp.max(jnp.abs(out - ref)))
    assert jnp.allclose(out, ref, atol=1e-4, rtol=1e-4), err

    print("KERNEL_OK")
</pallas_src>

<mosaic_0001>
module attributes {stable_mosaic.version = 11 : i64} {
  func.func @_unet_down_kernel(%arg0: i32, %arg1: i32, %arg2: memref<1x8x9x16xf32, #tpu.memory_space<vmem>>, %arg3: memref<1x1x9x16xf32, #tpu.memory_space<vmem>>, %arg4: memref<2x2x16x128xf32, #tpu.memory_space<vmem>>, %arg5: memref<1x64x128xf32, #tpu.memory_space<vmem>>, %arg6: memref<1x128xf32, #tpu.memory_space<vmem>>, %arg7: memref<1x128xf32, #tpu.memory_space<vmem>>) attributes {dimension_semantics = [#tpu.dimension_semantics<parallel>, #tpu.dimension_semantics<arbitrary>], iteration_bounds = array<i64: 2, 1>, scalar_prefetch = 0 : i64, scratch_operands = 2 : i64, tpu.core_type = #tpu.core_type<tc>, window_params = [{transform_indices = @transform_0, window_bounds = array<i64: 1, 8, 9, 16>}, {transform_indices = @transform_1, window_bounds = array<i64: 1, 1, 9, 16>}, {pipeline_mode = #tpu.pipeline_mode<synchronous>, transform_indices = @transform_2, window_bounds = array<i64: 2, 2, 16, 128>}, {transform_indices = @transform_3, window_bounds = array<i64: 1, 64, 128>}]} {
    %c0_i32 = arith.constant 0 : i32
    %0 = arith.cmpi eq, %arg1, %c0_i32 : i32
    %1 = arith.extui %0 : i1 to i32
    %c0_i32_0 = arith.constant 0 : i32
    %2 = arith.cmpi ne, %1, %c0_i32_0 : i32
    scf.if %2 {
      %cst_41 = arith.constant 0.000000e+00 : f32
      %53 = vector.broadcast %cst_41 : f32 to vector<1x128xf32>
      %c0_42 = arith.constant 0 : index
      %c0_43 = arith.constant 0 : index
      %54 = vector.load %arg6[%c0_42, %c0_43] : memref<1x128xf32, #tpu.memory_space<vmem>>, vector<1x128xf32>
      tpu.vector_store %arg6[%c0_42, %c0_43], %53 {strides = array<i32>} : memref<1x128xf32, #tpu.memory_space<vmem>>, vector<1x128xf32>,
      %cst_44 = arith.constant 0.000000e+00 : f32
      %55 = vector.broadcast %cst_44 : f32 to vector<1x128xf32>
      %c0_45 = arith.constant 0 : index
      %c0_46 = arith.constant 0 : index
      %56 = vector.load %arg7[%c0_45, %c0_46] : memref<1x128xf32, #tpu.memory_space<vmem>>, vector<1x128xf32>
      tpu.vector_store %arg7[%c0_45, %c0_46], %55 {strides = array<i32>} : memref<1x128xf32, #tpu.memory_space<vmem>>, vector<1x128xf32>,
    } else {
    }
    %c0 = arith.constant 0 : index
    %c0_1 = arith.constant 0 : index
    %c0_2 = arith.constant 0 : index
    %c0_3 = arith.constant 0 : index
    %3 = vector.load %arg2[%c0, %c0_1, %c0_2, %c0_3] : memref<1x8x9x16xf32, #tpu.memory_space<vmem>>, vector<1x8x9x16xf32>
    %4 = vector.shape_cast %3 : vector<1x8x9x16xf32> to vector<8x9x16xf32>
    %c0_4 = arith.constant 0 : index
    %c0_5 = arith.constant 0 : index
    %c0_6 = arith.constant 0 : index
    %c0_7 = arith.constant 0 : index
    %5 = vector.load %arg3[%c0_4, %c0_5, %c0_6, %c0_7] : memref<1x1x9x16xf32, #tpu.memory_space<vmem>>, vector<1x1x9x16xf32>
    %6 = vector.shape_cast %5 : vector<1x1x9x16xf32> to vector<1x9x16xf32>
    %7 = tpu.concatenate %4, %6 in 0 : vector<8x9x16xf32>, vector<1x9x16xf32> -> vector<9x9x16xf32>
    %cst = arith.constant 0.000000e+00 : f32
    %8 = vector.broadcast %cst : f32 to vector<64x128xf32>
    %9 = vector.extract_strided_slice %7 {offsets = [0, 0, 0], sizes = [8, 8, 16], strides = [1, 1, 1]} : vector<9x9x16xf32> to vector<8x8x16xf32>
    %10 = vector.shape_cast %9 : vector<8x8x16xf32> to vector<64x16xf32>
    %c0_8 = arith.constant 0 : index
    %c0_9 = arith.constant 0 : index
    %c0_10 = arith.constant 0 : index
    %c0_11 = arith.constant 0 : index
    %11 = vector.load %arg4[%c0_8, %c0_9, %c0_10, %c0_11] : memref<2x2x16x128xf32, #tpu.memory_space<vmem>>, vector<1x1x16x128xf32>
    %12 = vector.shape_cast %11 : vector<1x1x16x128xf32> to vector<16x128xf32>
    %cst_12 = arith.constant dense<0.000000e+00> : vector<64x128xf32>
    %13 = tpu.matmul %10, %12, %cst_12 {dimension_numbers = #tpu.dot_dimension_numbers<[1], [0], [0], [1], [0, 0, 1, 1], [], []>} : vector<64x16xf32>, vector<16x128xf32>, vector<64x128xf32> -> vector<64x128xf32>
    %14 = arith.addf %8, %13 : vector<64x128xf32>
    %15 = vector.extract_strided_slice %7 {offsets = [0, 1, 0], sizes = [8, 8, 16], strides = [1, 1, 1]} : vector<9x9x16xf32> to vector<8x8x16xf32>
    %16 = vector.shape_cast %15 : vector<8x8x16xf32> to vector<64x16xf32>
    %c0_13 = arith.constant 0 : index
    %c1 = arith.constant 1 : index
    %c0_14 = arith.constant 0 : index
    %c0_15 = arith.constant 0 : index
    %17 = vector.load %arg4[%c0_13, %c1, %c0_14, %c0_15] : memref<2x2x16x128xf32, #tpu.memory_space<vmem>>, vector<1x1x16x128xf32>
    %18 = vector.shape_cast %17 : vector<1x1x16x128xf32> to vector<16x128xf32>
    %cst_16 = arith.constant dense<0.000000e+00> : vector<64x128xf32>
    %19 = tpu.matmul %16, %18, %cst_16 {dimension_numbers = #tpu.dot_dimension_numbers<[1], [0], [0], [1], [0, 0, 1, 1], [], []>} : vector<64x16xf32>, vector<16x128xf32>, vector<64x128xf32> -> vector<64x128xf32>
    %20 = arith.addf %14, %19 : vector<64x128xf32>
    %21 = vector.extract_strided_slice %7 {offsets = [1, 0, 0], sizes = [8, 8, 16], strides = [1, 1, 1]} : vector<9x9x16xf32> to vector<8x8x16xf32>
    %22 = vector.shape_cast %21 : vector<8x8x16xf32> to vector<64x16xf32>
    %c1_17 = arith.constant 1 : index
    %c0_18 = arith.constant 0 : index
    %c0_19 = arith.constant 0 : index
    %c0_20 = arith.constant 0 : index
    %23 = vector.load %arg4[%c1_17, %c0_18, %c0_19, %c0_20] : memref<2x2x16x128xf32, #tpu.memory_space<vmem>>, vector<1x1x16x128xf32>
    %24 = vector.shape_cast %23 : vector<1x1x16x128xf32> to vector<16x128xf32>
    %cst_21 = arith.constant dense<0.000000e+00> : vector<64x128xf32>
    %25 = tpu.matmul %22, %24, %cst_21 {dimension_numbers = #tpu.dot_dimension_numbers<[1], [0], [0], [1], [0, 0, 1, 1], [], []>} : vector<64x16xf32>, vector<16x128xf32>, vector<64x128xf32> -> vector<64x128xf32>
    %26 = arith.addf %20, %25 : vector<64x128xf32>
    %27 = vector.extract_strided_slice %7 {offsets = [1, 1, 0], sizes = [8, 8, 16], strides = [1, 1, 1]} : vector<9x9x16xf32> to vector<8x8x16xf32>
    %28 = vector.shape_cast %27 : vector<8x8x16xf32> to vector<64x16xf32>
    %c1_22 = arith.constant 1 : index
    %c1_23 = arith.constant 1 : index
    %c0_24 = arith.constant 0 : index
    %c0_25 = arith.constant 0 : index
    %29 = vector.load %arg4[%c1_22, %c1_23, %c0_24, %c0_25] : memref<2x2x16x128xf32, #tpu.memory_space<vmem>>, vector<1x1x16x128xf32>
    %30 = vector.shape_cast %29 : vector<1x1x16x128xf32> to vector<16x128xf32>
    %cst_26 = arith.constant dense<0.000000e+00> : vector<64x128xf32>
    %31 = tpu.matmul %28, %30, %cst_26 {dimension_numbers = #tpu.dot_dimension_numbers<[1], [0], [0], [1], [0, 0, 1, 1], [], []>} : vector<64x16xf32>, vector<16x128xf32>, vector<64x128xf32> -> vector<64x128xf32>
    %32 = arith.addf %26, %31 : vector<64x128xf32>
    %c0_27 = arith.constant 0 : index
    %c0_28 = arith.constant 0 : index
    %33 = vector.load %arg6[%c0_27, %c0_28] : memref<1x128xf32, #tpu.memory_space<vmem>>, vector<1x128xf32>
    %cst_29 = arith.constant dense<0.000000e+00> : vector<128xf32>
    %34 = vector.multi_reduction <add>, %32, %cst_29 [0] : vector<64x128xf32> to vector<128xf32>
    %35 = vector.shape_cast %34 : vector<128xf32> to vector<1x128xf32>
    %36 = arith.addf %33, %35 : vector<1x128xf32>
    %c0_30 = arith.constant 0 : index
    %c0_31 = arith.constant 0 : index
    %37 = vector.load %arg6[%c0_30, %c0_31] : memref<1x128xf32, #tpu.memory_space<vmem>>, vector<1x128xf32>
    tpu.vector_store %arg6[%c0_30, %c0_31], %36 {strides = array<i32>} : memref<1x128xf32, #tpu.memory_space<vmem>>, vector<1x128xf32>,
    %c0_32 = arith.constant 0 : index
    %c0_33 = arith.constant 0 : index
    %38 = vector.load %arg7[%c0_32, %c0_33] : memref<1x128xf32, #tpu.memory_space<vmem>>, vector<1x128xf32>
    %39 = arith.mulf %32, %32 : vector<64x128xf32>
    %cst_34 = arith.constant dense<0.000000e+00> : vector<128xf32>
    %40 = vector.multi_reduction <add>, %39, %cst_34 [0] : vector<64x128xf32> to vector<128xf32>
    %41 = vector.shape_cast %40 : vector<128xf32> to vector<1x128xf32>
    %42 = arith.addf %38, %41 : vector<1x128xf32>
    %c0_35 = arith.constant 0 : index
    %c0_36 = arith.constant 0 : index
    %43 = vector.load %arg7[%c0_35, %c0_36] : memref<1x128xf32, #tpu.memory_space<vmem>>, vector<1x128xf32>
    tpu.vector_store %arg7[%c0_35, %c0_36], %42 {strides = array<i32>} : memref<1x128xf32, #tpu.memory_space<vmem>>, vector<1x128xf32>,
    %c64_i32 = arith.constant 64 : i32
    %44 = arith.muli %arg1, %c64_i32 : i32
    %45 = tpu.assume_multiple %44, 8 : i32
    %c0_37 = arith.constant 0 : index
    %46 = arith.index_cast %45 : i32 to index
    %c0_38 = arith.constant 0 : index
    %47 = vector.load %arg5[%c0_37, %46, %c0_38] : memref<1x64x128xf32, #tpu.memory_space<vmem>>, vector<1x64x128xf32>
    %48 = vector.shape_cast %47 : vector<1x64x128xf32> to vector<64x128xf32>
    %49 = vector.shape_cast %32 : vector<64x128xf32> to vector<1x64x128xf32>
    tpu.vector_store %arg5[%c0_37, %46, %c0_38], %49 {strides = array<i32>} : memref<1x64x128xf32, #tpu.memory_space<vmem>>, vector<1x64x128xf32>,
    %c0_i32_39 = arith.constant 0 : i32
    %50 = arith.cmpi eq, %arg1, %c0_i32_39 : i32
    %51 = arith.extui %50 : i1 to i32
    %c0_i32_40 = arith.constant 0 : i32
    %52 = arith.cmpi ne, %51, %c0_i32_40 : i32
    scf.if %52 {
      %c0_41 = arith.constant 0 : index
      %c0_42 = arith.constant 0 : index
      %53 = vector.load %arg6[%c0_41, %c0_42] : memref<1x128xf32, #tpu.memory_space<vmem>>, vector<1x128xf32>
      %cst_43 = arith.constant 6.400000e+01 : f32
      %54 = vector.broadcast %cst_43 : f32 to vector<1x128xf32>
      %55 = arith.divf %53, %54 : vector<1x128xf32>
      %c0_44 = arith.constant 0 : index
      %c0_45 = arith.constant 0 : index
      %56 = vector.load %arg7[%c0_44, %c0_45] : memref<1x128xf32, #tpu.memory_space<vmem>>, vector<1x128xf32>
      %cst_46 = arith.constant 6.400000e+01 : f32
      %57 = vector.broadcast %cst_46 : f32 to vector<1x128xf32>
      %58 = arith.divf %56, %57 : vector<1x128xf32>
      %59 = arith.mulf %55, %55 : vector<1x128xf32>
      %60 = arith.subf %58, %59 : vector<1x128xf32>
      %cst_47 = arith.constant 0.000000e+00 : f32
      %61 = vector.broadcast %cst_47 : f32 to vector<1x128xf32>
      %62 = arith.maximumf %60, %61 : vector<1x128xf32>
      %cst_48 = arith.constant 9.99999974E-6 : f32
      %63 = vector.broadcast %cst_48 : f32 to vector<1x128xf32>
      %64 = arith.addf %62, %63 : vector<1x128xf32>
      %65 = math.rsqrt %64 : vector<1x128xf32>
      %c0_i32_49 = arith.constant 0 : i32
      %c64_i32_50 = arith.constant 64 : i32
      %66 = arith.muli %c0_i32_49, %c64_i32_50 : i32
      %67 = tpu.assume_multiple %66, 8 : i32
      %c0_51 = arith.constant 0 : index
      %68 = arith.index_cast %67 : i32 to index
      %c0_52 = arith.constant 0 : index
      %69 = vector.load %arg5[%c0_51, %68, %c0_52] : memref<1x64x128xf32, #tpu.memory_space<vmem>>, vector<1x64x128xf32>
      %70 = vector.shape_cast %69 : vector<1x64x128xf32> to vector<64x128xf32>
      %71 = vector.broadcast %55 : vector<1x128xf32> to vector<64x128xf32>
      %72 = arith.subf %70, %71 : vector<64x128xf32>
      %73 = vector.broadcast %65 : vector<1x128xf32> to vector<64x128xf32>
      %74 = arith.mulf %72, %73 : vector<64x128xf32>
      %cst_53 = arith.constant 0.000000e+00 : f32
      %75 = vector.broadcast %cst_53 : f32 to vector<64x128xf32>
      %76 = arith.cmpf oge, %74, %75 : vector<64x128xf32>
      %cst_54 = arith.constant 2.000000e-01 : f32
      %77 = vector.broadcast %cst_54 : f32 to vector<64x128xf32>
      %78 = arith.mulf %77, %74 : vector<64x128xf32>
      %79 = arith.select %76, %74, %78 : vector<64x128xi1>, vector<64x128xf32>
      %c0_55 = arith.constant 0 : index
      %80 = arith.index_cast %67 : i32 to index
      %c0_56 = arith.constant 0 : index
      %81 = vector.load %arg5[%c0_55, %80, %c0_56] : memref<1x64x128xf32, #tpu.memory_space<vmem>>, vector<1x64x128xf32>
      %82 = vector.shape_cast %81 : vector<1x64x128xf32> to vector<64x128xf32>
      %83 = vector.shape_cast %79 : vector<64x128xf32> to vector<1x64x128xf32>
      tpu.vector_store %arg5[%c0_55, %80, %c0_56], %83 {strides = array<i32>} : memref<1x64x128xf32, #tpu.memory_space<vmem>>, vector<1x64x128xf32>,
      %c1_i32 = arith.constant 1 : i32
    } else {
    }
    return
  }
  func.func @transform_0(%arg0: i32, %arg1: i32) -> (i32, i32, i32, i32) {
    %c0_i32 = arith.constant 0 : i32
    %c0_i32_0 = arith.constant 0 : i32
    %c0_i32_1 = arith.constant 0 : i32
    return %arg0, %arg1, %c0_i32, %c0_i32_0 : i32, i32, i32, i32
  }
  func.func @transform_1(%arg0: i32, %arg1: i32) -> (i32, i32, i32, i32) {
    %c1_i32 = arith.constant 1 : i32
    %0 = arith.addi %arg1, %c1_i32 : i32
    %c8_i32 = arith.constant 8 : i32
    %1 = arith.muli %0, %c8_i32 : i32
    %c0_i32 = arith.constant 0 : i32
    %c0_i32_0 = arith.constant 0 : i32
    %c0_i32_1 = arith.constant 0 : i32
    return %arg0, %1, %c0_i32, %c0_i32_0 : i32, i32, i32, i32
  }
  func.func @transform_2(%arg0: i32, %arg1: i32) -> (i32, i32, i32, i32) {
    %c0_i32 = arith.constant 0 : i32
    %c0_i32_0 = arith.constant 0 : i32
    %c0_i32_1 = arith.constant 0 : i32
    %c0_i32_2 = arith.constant 0 : i32
    %c0_i32_3 = arith.constant 0 : i32
    return %c0_i32, %c0_i32_0, %c0_i32_1, %c0_i32_2 : i32, i32, i32, i32
  }
  func.func @transform_3(%arg0: i32, %arg1: i32) -> (i32, i32, i32) {
    %c0_i32 = arith.constant 0 : i32
    %c0_i32_0 = arith.constant 0 : i32
    %c0_i32_1 = arith.constant 0 : i32
    return %arg0, %c0_i32, %c0_i32_0 : i32, i32, i32
  }
}

</mosaic_0001>

<llo_original>
// kernel: tpu_custom_call.1
$region0: #{tpu_custom_call.1}
  #allocation0 [shape = 'u32[]', space=smem, size = 0x4, offset = 0x4, fixed_abs, tag = 'smem constant byte address 0x4 - core index']
  #allocation1 [shape = 'u32[144,128]{1,0:T(1,128)}', space=vmem, size = 0x12000, scoped, tag = 'internal scratch']
  #allocation2 [shape = 'f32[1,128]{1,0:T(1,128)}', space=vmem, size = 0x200, scoped, tag = 'scratch operand']
  #allocation3 [shape = 'f32[1,128]{1,0:T(1,128)}', space=vmem, size = 0x200, scoped, tag = 'scratch operand']
  %s0 = inlined_call_operand.vmem [shape: f32[2,9,9,16], index: 0, kind: input, shape index: {}]
  %s1 = inlined_call_operand.vmem [shape: f32[2,9,9,16], index: 1, kind: input, shape index: {}]
  %s2 = inlined_call_operand.vmem [shape: f32[2,2,16,128], index: 2, kind: input, shape index: {}]
  %s3 = inlined_call_operand.hbm [shape: f32[2,64,128], index: 3, kind: output, shape index: {}]
  %s4 = sld [smem:[#allocation0]]
  $region53: #{tpu_custom_call.1} parent=0
    _
  %s6 = ssub.s32 1, %s4
  %s7 = scalar_select 0, %s6, %s4
  $region1: #{tpu_custom_call.1} parent=0
    #allocation4 [shape = 'u8[65536]{0}', space=vmem, size = 0x10000, scoped, tag = 'output window, operand 0']
    #allocation5 [shape = 's32[2]{0}', space=sflag, size = 0x8, scoped, tag = 'scoped memory for tpu_custom_call.1']
    %8 = vsyncpa [#allocation5], 0
    %s9 = scalar_lea.sflag [#allocation5], 1
    %10 = vsyncpa %s9, 0
    loop: start=0, step=1, limit=4
    $region2: #{tpu_custom_call.1} parent=1 // loop_pre_header
      _
    $region3: #{tpu_custom_call.1} parent=1 // loop_header
      %s12 = sphi 0, %s16
      %p13 = scmp.ge.s32.totalorder %s12, 4
      %s19 = sphi 0, %s31
      %s20 = sphi 0, %s27
      %s21 = sphi 0, %s19
      %s22 = sphi 0, %s20
      %s23 = sphi 0, %s21
      %s24 = sphi 0, %s22
      %s36 = sphi 0, %s38
      %s39 = sphi 0, %s36
      %s40 = sphi 0, %s39
      %s56 = sphi 0, %s40
      %s68 = sphi 0, %s70
      %s71 = sphi 0, %s68
      %s72 = sphi 0, %s71
      %s88 = sphi 0, %s72
      %s92 = sphi 0, %s92
      %s94 = sphi 0, %s92
      %s95 = sphi 0, %s94
      %s109 = sphi 0, %s95
      %s115 = sphi 0, %s117
      %s118 = sphi 0, %s115
      %s119 = sphi 0, %s118
      %s135 = sphi 0, %s119
    $region4: #{tpu_custom_call.1} parent=1 // loop_header_branch
      %15 = sbr.rel (%p13) target = $region8
    $region5: #{tpu_custom_call.1} parent=1 // loop_body
      %s17 = ssub.s32 %s12, 1
      %s18 = ssub.s32 %s12, 2
      %s25 = sadd.s32 1, %s20
      %p26 = scmp.ge.s32.totalorder %s25, 1
      %s27 = scalar_select %p26, 0, %s25
      %s28 = sadd.s32 1, %s19
      %s29 = scalar_select %p26, %s28, %s19
      %p30 = scmp.ge.s32.totalorder %s29, 2
      %s31 = scalar_select %p30, 0, %s29
      %s32 = ssub.s32 %s19, %s31
      %s33 = ssub.s32 %s20, %s27
      %s34 = sor.u32 %s32, %s33
      %p35 = scmp.eq.s32.totalorder %s34, 0
      %s37 = sadd.s32 %s36, 1
      %s38 = scalar_select %p35, %s36, %s37
      %p41 = pneg %p35
      %p42 = scmp.eq.s32.totalorder %s12, 1
      %p43 = por %p41, %p42
      %p44 = scmp.ne.s32.totalorder %s36, %s39
      %p45 = scmp.eq.s32.totalorder %s12, 0
      %p46 = por %p44, %p45
      %p47 = scmp.ne.s32.totalorder %s36, %s39
      %p48 = scmp.eq.s32.totalorder %s17, 1
      %p49 = por %p47, %p48
      %p50 = scmp.ne.s32.totalorder %s39, %s40
      %p51 = scmp.eq.s32.totalorder %s17, 0
      %p52 = por %p50, %p51
      %p53 = scmp.ne.s32.totalorder %s39, %s40
      %p54 = scmp.eq.s32.totalorder %s18, 1
      %p55 = por %p53, %p54
      %p57 = scmp.ne.s32.totalorder %s40, %s56
      %p58 = scmp.eq.s32.totalorder %s18, 0
      %p59 = por %p57, %p58
      %s60 = sadd.s32 %s20, 1
      %s61 = smul.u32 %s60, 8
      %s62 = sadd.s32 %s27, 1
      %s63 = smul.u32 %s62, 8
      %s64 = ssub.s32 %s19, %s31
      %s65 = ssub.s32 %s61, %s63
      %s66 = sor.u32 %s64, %s65
      %p67 = scmp.eq.s32.totalorder %s66, 0
      %s69 = sadd.s32 %s68, 1
      %s70 = scalar_select %p67, %s68, %s69
      %p73 = pneg %p67
      %p74 = scmp.eq.s32.totalorder %s12, 1
      %p75 = por %p73, %p74
      %p76 = scmp.ne.s32.totalorder %s68, %s71
      %p77 = scmp.eq.s32.totalorder %s12, 0
      %p78 = por %p76, %p77
      %p79 = scmp.ne.s32.totalorder %s68, %s71
      %p80 = scmp.eq.s32.totalorder %s17, 1
      %p81 = por %p79, %p80
      %p82 = scmp.ne.s32.totalorder %s71, %s72
      %p83 = scmp.eq.s32.totalorder %s17, 0
      %p84 = por %p82, %p83
      %p85 = scmp.ne.s32.totalorder %s71, %s72
      %p86 = scmp.eq.s32.totalorder %s18, 1
      %p87 = por %p85, %p86
      %p89 = scmp.ne.s32.totalorder %s72, %s88
      %p90 = scmp.eq.s32.totalorder %s18, 0
      %p91 = por %p89, %p90
      %s93 = sadd.s32 %s92, 1
      %p96 = scmp.eq.s32.totalorder %s12, 1
      %p97 = scmp.ne.s32.totalorder %s92, %s94
      %p98 = scmp.eq.s32.totalorder %s12, 0
      %p99 = por %p97, %p98
      %p100 = scmp.ne.s32.totalorder %s92, %s94
      %p101 = scmp.eq.s32.totalorder %s17, 1
      %p102 = por %p100, %p101
      %p103 = scmp.ne.s32.totalorder %s94, %s95
      %p104 = scmp.eq.s32.totalorder %s17, 0
      %p105 = por %p103, %p104
      %p106 = scmp.ne.s32.totalorder %s94, %s95
      %p107 = scmp.eq.s32.totalorder %s18, 1
      %p108 = por %p106, %p107
      %p110 = scmp.ne.s32.totalorder %s95, %s109
      %p111 = scmp.eq.s32.totalorder %s18, 0
      %p112 = por %p110, %p111
      %s113 = ssub.s32 %s19, %s31
      %p114 = scmp.eq.s32.totalorder %s113, 0
      %s116 = sadd.s32 %s115, 1
      %s117 = scalar_select %p114, %s115, %s116
      %p120 = pneg %p114
      %p121 = scmp.eq.s32.totalorder %s12, 1
      %p122 = por %p120, %p121
      %p123 = scmp.ne.s32.totalorder %s115, %s118
      %p124 = scmp.eq.s32.totalorder %s12, 0
      %p125 = por %p123, %p124
      %p126 = scmp.ne.s32.totalorder %s115, %s118
      %p127 = scmp.eq.s32.totalorder %s17, 1
      %p128 = por %p126, %p127
      %p129 = scmp.ne.s32.totalorder %s118, %s119
      %p130 = scmp.eq.s32.totalorder %s17, 0
      %p131 = por %p129, %p130
      %p132 = scmp.ne.s32.totalorder %s118, %s119
      %p133 = scmp.eq.s32.totalorder %s18, 1
      %p134 = por %p132, %p133
      %p136 = scmp.ne.s32.totalorder %s119, %s135
      %p137 = scmp.eq.s32.totalorder %s18, 0
      %p138 = por %p136, %p137
      %p139 = scmp.le.s32.totalorder 1, %s12
      %p140 = scmp.lt.s32.totalorder %s12, 3
      %p141 = pnand %p139, %p140
      %p142 = pneg %p141
      // Predicated region
      $region9: #{tpu_custom_call.1} parent=5 // pred_check
        _
      $region10: #{tpu_custom_call.1} parent=5 // pred_check_branch
        %144 = sbr.rel (%p141) target = $region12
      $region11: #{tpu_custom_call.1} parent=5 // pred_region
        %s145 = ssub.s32 %s12, 1
        // Predicated region
        $region13: #{tpu_custom_call.1} parent=11 // pred_check
          %p146 = pneg %p105
        $region14: #{tpu_custom_call.1} parent=11 // pred_check_branch
          %148 = sbr.rel (%p146) target = $region16
        $region15: #{tpu_custom_call.1} parent=11 // pred_region
          _
        $region16: #{tpu_custom_call.1} parent=11 // pred_fallthru
          _
      $region12: #{tpu_custom_call.1} parent=5 // pred_fallthru
        _
      %p149 = scmp.lt.s32.totalorder %s12, 2
      // Predicated region
      $region17: #{tpu_custom_call.1} parent=5 // pred_check
        %p150 = pneg %p149
      $region18: #{tpu_custom_call.1} parent=5 // pred_check_branch
        %152 = sbr.rel (%p150) target = $region20
      $region19: #{tpu_custom_call.1} parent=5 // pred_region
        // Predicated region
        $region21: #{tpu_custom_call.1} parent=19 // pred_check
          %p153 = pneg %p46
        $region22: #{tpu_custom_call.1} parent=19 // pred_check_branch
          %155 = sbr.rel (%p153) target = $region24
        $region23: #{tpu_custom_call.1} parent=19 // pred_region
          %s156 = smul.u32 8, %s20
          %s157 = ssub.s32 9, %s156
          %p158 = scmp.lt.s32.totalorder %s157, 8
          %s159 = scalar_select %p158, %s157, 8
          %s160 = smul.u32 128, %s159
          %s161 = smul.u32 %s160, 2
          %p162 = scmp.lt.s32.totalorder %s19, 1
          %s163 = scalar_select %p162, %s19, 1
          %p164 = scmp.lt.s32.totalorder %s156, 8
          %s165 = scalar_select %p164, %s156, 8
          %s166 = smul.addr %s165, 2
          %s167 = smul.addr %s163, 18
          %s168 = sadd.s32 %s166, %s167
          %s169 = smul.addr %s168, 8
          %s170 = scalar_lea.vmem %s0, %s169
          %s171 = smul.u32 8, %s20
          %s172 = ssub.s32 9, %s171
          %p173 = scmp.lt.s32.totalorder %s172, 8
          %s174 = scalar_select %p173, %s172, 8
          %s175 = smul.u32 128, %s174
          %s176 = smul.u32 %s175, 2
        $region24: #{tpu_custom_call.1} parent=19 // pred_fallthru
          _
        // Predicated region
        $region25: #{tpu_custom_call.1} parent=19 // pred_check
          %p177 = pneg %p78
        $region26: #{tpu_custom_call.1} parent=19 // pred_check_branch
          %179 = sbr.rel (%p177) target = $region28
        $region27: #{tpu_custom_call.1} parent=19 // pred_region
          %s180 = sadd.s32 %s20, 1
          %s181 = smul.u32 %s180, 8
          %p182 = scmp.lt.s32.totalorder %s19, 1
          %s183 = scalar_select %p182, %s19, 1
          %p184 = scmp.lt.s32.totalorder %s181, 8
          %s185 = scalar_select %p184, %s181, 8
          %s186 = smul.addr %s185, 2
          %s187 = smul.addr %s183, 18
          %s188 = sadd.s32 %s186, %s187
          %s189 = smul.addr %s188, 8
          %s190 = scalar_lea.vmem %s1, %s189
          %s191 = sadd.s32 %s20, 1
          %s192 = smul.u32 %s191, 8
        $region28: #{tpu_custom_call.1} parent=19 // pred_fallthru
          _
      $region20: #{tpu_custom_call.1} parent=5 // pred_fallthru
        _
      %p193 = scmp.le.s32.totalorder 1, %s12
      %p194 = scmp.lt.s32.totalorder %s12, 3
      %p195 = pnand %p193, %p194
      %p196 = pneg %p195
      // Predicated region
      $region29: #{tpu_custom_call.1} parent=5 // pred_check
        _
      $region30: #{tpu_custom_call.1} parent=5 // pred_check_branch
        %198 = sbr.rel (%p195) target = $region32
      $region31: #{tpu_custom_call.1} parent=5 // pred_region
        %s199 = ssub.s32 %s12, 1
        %s200 = smul.u32 8, %s22
        %s201 = ssub.s32 9, %s200
        %p202 = scmp.lt.s32.totalorder %s201, 8
        %s203 = scalar_select %p202, %s201, 8
        %s204 = smul.u32 128, %s203
        %s205 = smul.u32 %s204, 2
        %p206 = scmp.lt.s32.totalorder %s21, 1
        %s207 = scalar_select %p206, %s21, 1
        %p208 = scmp.lt.s32.totalorder %s200, 8
        %s209 = scalar_select %p208, %s200, 8
        %s210 = smul.addr %s209, 2
        %s211 = smul.addr %s207, 18
        %s212 = sadd.s32 %s210, %s211
        %s213 = smul.addr %s212, 8
        %s214 = scalar_lea.vmem %s0, %s213
        %p215 = pneg %p52
        %p216 = pneg %p49
        %s217 = sadd.s32 %s22, 1
        %s218 = smul.u32 %s217, 8
        %p219 = scmp.lt.s32.totalorder %s21, 1
        %s220 = scalar_select %p219, %s21, 1
        %p221 = scmp.lt.s32.totalorder %s218, 8
        %s222 = scalar_select %p221, %s218, 8
        %s223 = smul.addr %s222, 2
        %s224 = smul.addr %s220, 18
        %s225 = sadd.s32 %s223, %s224
        %s226 = smul.addr %s225, 8
        %s227 = scalar_lea.vmem %s1, %s226
        %p228 = pneg %p84
        %p229 = pneg %p81
        %p230 = pneg %p105
        %p231 = pneg %p102
        %p232 = pneg %p131
        %p233 = pneg %p128
        %s234 = sand.u32 %s118, 1
        %s235 = scalar_lea.sflag [#allocation5], %s234
        %s236 = sand.u32 %s118, 1
        %s237 = smul.addr %s236, 64
        %s238 = scalar_lea.vmem [#allocation4], %s237
        %s239 = smul.u32 8, %s22
        %s240 = ssub.s32 9, %s239
        %p241 = scmp.lt.s32.totalorder %s240, 8
        %s242 = scalar_select %p241, %s240, 8
        %s243 = smul.u32 128, %s242
        %s244 = smul.u32 %s243, 2
        %p245 = scmp.lt.s32.totalorder %s21, 1
        %s246 = scalar_select %p245, %s21, 1
        %p247 = scmp.lt.s32.totalorder %s239, 8
        %s248 = scalar_select %p247, %s239, 8
        %s249 = smul.addr %s248, 2
        %s250 = smul.addr %s246, 18
        %s251 = sadd.s32 %s249, %s250
        %s252 = smul.addr %s251, 8
        %s253 = scalar_lea.vmem %s0, %s252
        %s254 = smul.u32 8, %s22
        %s255 = ssub.s32 9, %s254
        %p256 = scmp.lt.s32.totalorder %s255, 8
        %s257 = scalar_select %p256, %s255, 8
        %s258 = smul.u32 128, %s257
        %s259 = smul.u32 %s258, 2
        %s260 = sadd.s32 %s22, 1
        %s261 = smul.u32 %s260, 8
        %p262 = scmp.lt.s32.totalorder %s21, 1
        %s263 = scalar_select %p262, %s21, 1
        %p264 = scmp.lt.s32.totalorder %s261, 8
        %s265 = scalar_select %p264, %s261, 8
        %s266 = smul.addr %s265, 2
        %s267 = smul.addr %s263, 18
        %s268 = sadd.s32 %s266, %s267
        %s269 = smul.addr %s268, 8
        %s270 = scalar_lea.vmem %s1, %s269
        %s271 = sadd.s32 %s22, 1
        %s272 = smul.u32 %s271, 8
        %p273 = scmp.eq.s32.totalorder %s22, 0
        // Predicated region
        $region33: #{tpu_custom_call.1} parent=31 // pred_check
          %p274 = pneg %p273
        $region34: #{tpu_custom_call.1} parent=31 // pred_check_branch
          %276 = sbr.rel (%p274) target = $region36
        $region35: #{tpu_custom_call.1} parent=31 // pred_region
          %277 = vst [vmem:[#allocation2] sm:$0x1] 0.0
          %278 = vst [vmem:[#allocation3] sm:$0x1] 0.0
        $region36: #{tpu_custom_call.1} parent=31 // pred_fallthru
          _
        %v279 = vld [vmem:[%s253] sm:$0xff]
        %v280 = vld [vmem:[%s253 + $0x8] sm:$0x1]
        %v281 = vld [vmem:[%s253 + $0x10] sm:$0xff]
        %v282 = vld [vmem:[%s253 + $0x18] sm:$0x1]
        %v283 = vld [vmem:[%s253 + $0x20] sm:$0xff]
        %v284 = vld [vmem:[%s253 + $0x28] sm:$0x1]
        %v285 = vld [vmem:[%s253 + $0x30] sm:$0xff]
        %v286 = vld [vmem:[%s253 + $0x38] sm:$0x1]
        %v287 = vld [vmem:[%s253 + $0x40] sm:$0xff]
        %v288 = vld [vmem:[%s253 + $0x48] sm:$0x1]
        %v289 = vld [vmem:[%s253 + $0x50] sm:$0xff]
        %v290 = vld [vmem:[%s253 + $0x58] sm:$0x1]
        %v291 = vld [vmem:[%s253 + $0x60] sm:$0xff]
        %v292 = vld [vmem:[%s253 + $0x68] sm:$0x1]
        %v293 = vld [vmem:[%s253 + $0x70] sm:$0xff]
        %v294 = vld [vmem:[%s253 + $0x78] sm:$0x1]
        %v295 = vld [vmem:[%s270] sm:$0xff]
        %v296 = vld [vmem:[%s270 + $0x8] sm:$0x1]
        %v297 = vld [vmem:[%s2] sm:$0xff]
        %v298 = vld [vmem:[%s2 + $0x8] sm:$0xff]
        %vm315 = vcmask 1046528
        %v316 = vrot.slane %v279, 1
        %v317 = vrot.slane %v280, 1
        %v318 = vsel %vm315, %v316, %v317
        %v319 = vrot.slane %v281, 1
        %v320 = vrot.slane %v282, 1
        %v321 = vsel %vm315, %v319, %v320
        %v322 = vrot.slane %v283, 1
        %v323 = vrot.slane %v284, 1
        %v324 = vsel %vm315, %v322, %v323
        %v325 = vrot.slane %v285, 1
        %v326 = vrot.slane %v286, 1
        %v327 = vsel %vm315, %v325, %v326
        %v328 = vrot.slane %v287, 1
        %v329 = vrot.slane %v288, 1
        %v330 = vsel %vm315, %v328, %v329
        %v331 = vrot.slane %v289, 1
        %v332 = vrot.slane %v290, 1
        %v333 = vsel %vm315, %v331, %v332
        %v334 = vrot.slane %v291, 1
        %v335 = vrot.slane %v292, 1
        %v336 = vsel %vm315, %v334, %v335
        %v337 = vrot.slane %v293, 1
        %v338 = vrot.slane %v294, 1
        %v339 = vsel %vm315, %v337, %v338
        %s340 = scalar_lea.vmem %s2, 16
        %v341 = vld [vmem:[%s340] sm:$0xff]
        %v342 = vld [vmem:[%s340 + $0x8] sm:$0xff]
        %vm343 = vcmask 130048
        %v344 = vsel %vm343, %v318, 0
        %v346 = vsel %vm343, %v321, 0
        %v348 = vsel %vm343, %v324, 0
        %v350 = vsel %vm343, %v327, 0
        %v352 = vsel %vm343, %v330, 0
        %v354 = vsel %vm343, %v333, 0
        %v356 = vsel %vm343, %v336, 0
        %v358 = vsel %vm343, %v339, 0
        %360 = vmatprep.subr.mxu0 0.0
        %361 = vmatpush1.msra.mxu0 %v341
        %362 = vmatprep.subr.mxu0 0.0
        %363 = vmatpush1.msra.mxu0 %v342
        %364 = vmatprep.subr.mxu0 0.0
        %365 = vmatpush1.msra.mxu0 0.0
        %366 = vmatprep.subr.mxu0 0.0
        %367 = vmatpush1.msra.mxu0 0.0
        %368 = vmatprep.subr.mxu0 0.0
        %369 = vmatpush1.msra.mxu0 0.0
        %370 = vmatprep.subr.mxu0 0.0
        %371 = vmatpush1.msra.mxu0 0.0
        %372 = vmatprep.subr.mxu0 0.0
        %373 = vmatpush1.msra.mxu0 0.0
        %374 = vmatprep.subr.mxu0 0.0
        %375 = vmatpush1.msra.mxu0 0.0
        %376 = vmatprep.subr.mxu0 0.0
        %377 = vmatpush1.msra.mxu0 0.0
        %378 = vmatprep.subr.mxu0 0.0
        %379 = vmatpush1.msra.mxu0 0.0
        %380 = vmatprep.subr.mxu0 0.0
        %381 = vmatpush1.msra.mxu0 0.0
        %382 = vmatprep.subr.mxu0 0.0
        %383 = vmatpush1.msra.mxu0 0.0
        %384 = vmatprep.subr.mxu0 0.0
        %385 = vmatpush1.msra.mxu0 0.0
        %386 = vmatprep.subr.mxu0 0.0
        %387 = vmatpush1.msra.mxu0 0.0
        %388 = vmatprep.subr.mxu0 0.0
        %389 = vmatpush1.msra.mxu0 0.0
        %390 = vmatprep.subr.mxu0 0.0
        %391 = vmatpush1.msra.mxu0 0.0
        %392 = vmatprep.subr.mxu0 0.0
        %393 = vmatpush1.msra.mxu0 0.0
        %394 = vmatprep.subr.mxu0 0.0
        %395 = vmatpush1.msra.mxu0 0.0
        %396 = vmatprep.subr.mxu0 0.0
        %397 = vmatpush1.msra.mxu0 0.0
        %398 = vmatprep.subr.mxu0 0.0
        %399 = vmatpush1.msra.mxu0 0.0
        %400 = vmatprep.subr.mxu0 0.0
        %401 = vmatpush1.msra.mxu0 0.0
        %402 = vmatprep.subr.mxu0 0.0
        %403 = vmatpush1.msra.mxu0 0.0
        %404 = vmatprep.subr.mxu0 0.0
        %405 = vmatpush1.msra.mxu0 0.0
        %406 = vmatprep.subr.mxu0 0.0
        %407 = vmatpush1.msra.mxu0 0.0
        %408 = vmatprep.subr.mxu0 0.0
        %409 = vmatpush1.msra.mxu0 0.0
        %410 = vmatprep.subr.mxu0 0.0
        %411 = vmatpush1.msra.mxu0 0.0
        %412 = vmatprep.subr.mxu0 0.0
        %413 = vmatpush1.msra.mxu0 0.0
        %414 = vmatprep.subr.mxu0 0.0
        %415 = vmatpush1.msra.mxu0 0.0
        %416 = vmatprep.subr.mxu0 0.0
        %417 = vmatpush1.msra.mxu0 0.0
        %418 = vmatprep.subr.mxu0 0.0
        %419 = vmatpush1.msra.mxu0 0.0
        %420 = vmatprep.subr.mxu0 0.0
        %421 = vmatpush1.msra.mxu0 0.0
        %422 = vmatprep.subr.mxu0 0.0
        %423 = vmatpush1.msra.mxu0 0.0
        %424 = vmatprep.mubr.f32.mxu0 0.0
        %425 = vmatmul.mubr.f32.gmra.mrb[0].mxu0 %v344
        %v426 = vpop.f32.mrb[0].mxu0
        %v427 = vadd.f32 0.0, %v426
        %v428 = vpop.f32.mrb[0].mxu0
        %429 = vmatprep.mubr.f32.mxu0 0.0
        %430 = vmatmul.mubr.f32.gmra.mrb[0].mxu0 %v346
        %v431 = vpop.f32.mrb[0].mxu0
        %v432 = vadd.f32 0.0, %v431
        %v433 = vpop.f32.mrb[0].mxu0
        %434 = vmatprep.mubr.f32.mxu0 0.0
        %435 = vmatmul.mubr.f32.gmra.mrb[0].mxu0 %v348
        %v436 = vpop.f32.mrb[0].mxu0
        %v437 = vadd.f32 0.0, %v436
        %v438 = vpop.f32.mrb[0].mxu0
        %439 = vmatprep.mubr.f32.mxu0 0.0
        %440 = vmatmul.mubr.f32.gmra.mrb[0].mxu0 %v350
        %v441 = vpop.f32.mrb[0].mxu0
        %v442 = vadd.f32 0.0, %v441
        %v443 = vpop.f32.mrb[0].mxu0
        %444 = vmatprep.mubr.f32.mxu0 0.0
        %445 = vmatmul.mubr.f32.gmra.mrb[0].mxu0 %v352
        %v446 = vpop.f32.mrb[0].mxu0
        %v447 = vadd.f32 0.0, %v446
        %v448 = vpop.f32.mrb[0].mxu0
        %449 = vmatprep.mubr.f32.mxu0 0.0
        %450 = vmatmul.mubr.f32.gmra.mrb[0].mxu0 %v354
        %v451 = vpop.f32.mrb[0].mxu0
        %v452 = vadd.f32 0.0, %v451
        %v453 = vpop.f32.mrb[0].mxu0
        %454 = vmatprep.mubr.f32.mxu0 0.0
        %455 = vmatmul.mubr.f32.gmra.mrb[0].mxu0 %v356
        %v456 = vpop.f32.mrb[0].mxu0
        %v457 = vadd.f32 0.0, %v456
        %v458 = vpop.f32.mrb[0].mxu0
        %459 = vmatprep.mubr.f32.mxu0 0.0
        %460 = vmatmul.mubr.f32.gmra.mrb[0].mxu0 %v358
        %v461 = vpop.f32.mrb[0].mxu0
        %v462 = vadd.f32 0.0, %v461
        %v463 = vpop.f32.mrb[0].mxu0
        %464 = vdwg.mxu0
        %v465 = vsel %vm343, %v279, 0
        %v467 = vsel %vm343, %v281, 0
        %v469 = vsel %vm343, %v283, 0
        %v471 = vsel %vm343, %v285, 0
        %v473 = vsel %vm343, %v287, 0
        %v475 = vsel %vm343, %v289, 0
        %v477 = vsel %vm343, %v291, 0
        %v479 = vsel %vm343, %v293, 0
        %481 = vmatprep.subr.mxu0 0.0
        %482 = vmatpush1.msra.mxu0 %v297
        %483 = vmatprep.subr.mxu0 0.0
        %484 = vmatpush1.msra.mxu0 %v298
        %485 = vmatprep.subr.mxu0 0.0
        %486 = vmatpush1.msra.mxu0 0.0
        %487 = vmatprep.subr.mxu0 0.0
        %488 = vmatpush1.msra.mxu0 0.0
        %489 = vmatprep.subr.mxu0 0.0
        %490 = vmatpush1.msra.mxu0 0.0
        %491 = vmatprep.subr.mxu0 0.0
        %492 = vmatpush1.msra.mxu0 0.0
        %493 = vmatprep.subr.mxu0 0.0
        %494 = vmatpush1.msra.mxu0 0.0
        %495 = vmatprep.subr.mxu0 0.0
        %496 = vmatpush1.msra.mxu0 0.0
        %497 = vmatprep.subr.mxu0 0.0
        %498 = vmatpush1.msra.mxu0 0.0
        %499 = vmatprep.subr.mxu0 0.0
        %500 = vmatpush1.msra.mxu0 0.0
        %501 = vmatprep.subr.mxu0 0.0
        %502 = vmatpush1.msra.mxu0 0.0
        %503 = vmatprep.subr.mxu0 0.0
        %504 = vmatpush1.msra.mxu0 0.0
        %505 = vmatprep.subr.mxu0 0.0
        %506 = vmatpush1.msra.mxu0 0.0
        %507 = vmatprep.subr.mxu0 0.0
        %508 = vmatpush1.msra.mxu0 0.0
        %509 = vmatprep.subr.mxu0 0.0
        %510 = vmatpush1.msra.mxu0 0.0
        %511 = vmatprep.subr.mxu0 0.0
        %512 = vmatpush1.msra.mxu0 0.0
        %513 = vmatprep.subr.mxu0 0.0
        %514 = vmatpush1.msra.mxu0 0.0
        %515 = vmatprep.subr.mxu0 0.0
        %516 = vmatpush1.msra.mxu0 0.0
        %517 = vmatprep.subr.mxu0 0.0
        %518 = vmatpush1.msra.mxu0 0.0
        %519 = vmatprep.subr.mxu0 0.0
        %520 = vmatpush1.msra.mxu0 0.0
        %521 = vmatprep.subr.mxu0 0.0
        %522 = vmatpush1.msra.mxu0 0.0
        %523 = vmatprep.subr.mxu0 0.0
        %524 = vmatpush1.msra.mxu0 0.0
        %525 = vmatprep.subr.mxu0 0.0
        %526 = vmatpush1.msra.mxu0 0.0
        %527 = vmatprep.subr.mxu0 0.0
        %528 = vmatpush1.msra.mxu0 0.0
        %529 = vmatprep.subr.mxu0 0.0
        %530 = vmatpush1.msra.mxu0 0.0
        %531 = vmatprep.subr.mxu0 0.0
        %532 = vmatpush1.msra.mxu0 0.0
        %533 = vmatprep.subr.mxu0 0.0
        %534 = vmatpush1.msra.mxu0 0.0
        %535 = vmatprep.subr.mxu0 0.0
        %536 = vmatpush1.msra.mxu0 0.0
        %537 = vmatprep.subr.mxu0 0.0
        %538 = vmatpush1.msra.mxu0 0.0
        %539 = vmatprep.subr.mxu0 0.0
        %540 = vmatpush1.msra.mxu0 0.0
        %541 = vmatprep.subr.mxu0 0.0
        %542 = vmatpush1.msra.mxu0 0.0
        %543 = vmatprep.subr.mxu0 0.0
        %544 = vmatpush1.msra.mxu0 0.0
        %545 = vmatprep.mubr.f32.mxu0 0.0
        %546 = vmatmul.mubr.f32.gmra.mrb[0].mxu0 %v465
        %v547 = vpop.f32.mrb[0].mxu0
        %v548 = vadd.f32 %v427, %v547
        %v549 = vpop.f32.mrb[0].mxu0
        %550 = vmatprep.mubr.f32.mxu0 0.0
        %551 = vmatmul.mubr.f32.gmra.mrb[0].mxu0 %v467
        %v552 = vpop.f32.mrb[0].mxu0
        %v553 = vadd.f32 %v432, %v552
        %v554 = vpop.f32.mrb[0].mxu0
        %555 = vmatprep.mubr.f32.mxu0 0.0
        %556 = vmatmul.mubr.f32.gmra.mrb[0].mxu0 %v469
        %v557 = vpop.f32.mrb[0].mxu0
        %v558 = vadd.f32 %v437, %v557
        %v559 = vpop.f32.mrb[0].mxu0
        %560 = vmatprep.mubr.f32.mxu0 0.0
        %561 = vmatmul.mubr.f32.gmra.mrb[0].mxu0 %v471
        %v562 = vpop.f32.mrb[0].mxu0
        %v563 = vadd.f32 %v442, %v562
        %v564 = vpop.f32.mrb[0].mxu0
        %565 = vmatprep.mubr.f32.mxu0 0.0
        %566 = vmatmul.mubr.f32.gmra.mrb[0].mxu0 %v473
        %v567 = vpop.f32.mrb[0].mxu0
        %v568 = vadd.f32 %v447, %v567
        %v569 = vpop.f32.mrb[0].mxu0
        %570 = vmatprep.mubr.f32.mxu0 0.0
        %571 = vmatmul.mubr.f32.gmra.mrb[0].mxu0 %v475
        %v572 = vpop.f32.mrb[0].mxu0
        %v573 = vadd.f32 %v452, %v572
        %v574 = vpop.f32.mrb[0].mxu0
        %575 = vmatprep.mubr.f32.mxu0 0.0
        %576 = vmatmul.mubr.f32.gmra.mrb[0].mxu0 %v477
        %v577 = vpop.f32.mrb[0].mxu0
        %v578 = vadd.f32 %v457, %v577
        %v579 = vpop.f32.mrb[0].mxu0
        %580 = vmatprep.mubr.f32.mxu0 0.0
        %581 = vmatmul.mubr.f32.gmra.mrb[0].mxu0 %v479
        %v582 = vpop.f32.mrb[0].mxu0
        %v583 = vadd.f32 %v462, %v582
        %v584 = vpop.f32.mrb[0].mxu0
        %585 = vdwg.mxu0
        %s586 = scalar_lea.vmem %s2, 32
        %v587 = vld [vmem:[%s586] sm:$0xff]
        %v588 = vld [vmem:[%s586 + $0x8] sm:$0xff]
        %v590 = vsel %vm343, %v295, 0
        %592 = vmatprep.subr.mxu0 0.0
        %593 = vmatpush1.msra.mxu0 %v587
        %594 = vmatprep.subr.mxu0 0.0
        %595 = vmatpush1.msra.mxu0 %v588
        %596 = vmatprep.subr.mxu0 0.0
        %597 = vmatpush1.msra.mxu0 0.0
        %598 = vmatprep.subr.mxu0 0.0
        %599 = vmatpush1.msra.mxu0 0.0
        %600 = vmatprep.subr.mxu0 0.0
        %601 = vmatpush1.msra.mxu0 0.0
        %602 = vmatprep.subr.mxu0 0.0
        %603 = vmatpush1.msra.mxu0 0.0
        %604 = vmatprep.subr.mxu0 0.0
        %605 = vmatpush1.msra.mxu0 0.0
        %606 = vmatprep.subr.mxu0 0.0
        %607 = vmatpush1.msra.mxu0 0.0
        %608 = vmatprep.subr.mxu0 0.0
        %609 = vmatpush1.msra.mxu0 0.0
        %610 = vmatprep.subr.mxu0 0.0
        %611 = vmatpush1.msra.mxu0 0.0
        %612 = vmatprep.subr.mxu0 0.0
        %613 = vmatpush1.msra.mxu0 0.0
        %614 = vmatprep.subr.mxu0 0.0
        %615 = vmatpush1.msra.mxu0 0.0
        %616 = vmatprep.subr.mxu0 0.0
        %617 = vmatpush1.msra.mxu0 0.0
        %618 = vmatprep.subr.mxu0 0.0
        %619 = vmatpush1.msra.mxu0 0.0
        %620 = vmatprep.subr.mxu0 0.0
        %621 = vmatpush1.msra.mxu0 0.0
        %622 = vmatprep.subr.mxu0 0.0
        %623 = vmatpush1.msra.mxu0 0.0
        %624 = vmatprep.subr.mxu0 0.0
        %625 = vmatpush1.msra.mxu0 0.0
        %626 = vmatprep.subr.mxu0 0.0
        %627 = vmatpush1.msra.mxu0 0.0
        %628 = vmatprep.subr.mxu0 0.0
        %629 = vmatpush1.msra.mxu0 0.0
        %630 = vmatprep.subr.mxu0 0.0
        %631 = vmatpush1.msra.mxu0 0.0
        %632 = vmatprep.subr.mxu0 0.0
        %633 = vmatpush1.msra.mxu0 0.0
        %634 = vmatprep.subr.mxu0 0.0
        %635 = vmatpush1.msra.mxu0 0.0
        %636 = vmatprep.subr.mxu0 0.0
        %637 = vmatpush1.msra.mxu0 0.0
        %638 = vmatprep.subr.mxu0 0.0
        %639 = vmatpush1.msra.mxu0 0.0
        %640 = vmatprep.subr.mxu0 0.0
        %641 = vmatpush1.msra.mxu0 0.0
        %642 = vmatprep.subr.mxu0 0.0
        %643 = vmatpush1.msra.mxu0 0.0
        %644 = vmatprep.subr.mxu0 0.0
        %645 = vmatpush1.msra.mxu0 0.0
        %646 = vmatprep.subr.mxu0 0.0
        %647 = vmatpush1.msra.mxu0 0.0
        %648 = vmatprep.subr.mxu0 0.0
        %649 = vmatpush1.msra.mxu0 0.0
        %650 = vmatprep.subr.mxu0 0.0
        %651 = vmatpush1.msra.mxu0 0.0
        %652 = vmatprep.subr.mxu0 0.0
        %653 = vmatpush1.msra.mxu0 0.0
        %654 = vmatprep.subr.mxu0 0.0
        %655 = vmatpush1.msra.mxu0 0.0
        %656 = vmatprep.mubr.f32.mxu0 0.0
        %657 = vmatmul.mubr.f32.gmra.mrb[0].mxu0 %v467
        %v658 = vpop.f32.mrb[0].mxu0
        %v659 = vadd.f32 0.0, %v658
        %v660 = vpop.f32.mrb[0].mxu0
        %661 = vmatprep.mubr.f32.mxu0 0.0
        %662 = vmatmul.mubr.f32.gmra.mrb[0].mxu0 %v469
        %v663 = vpop.f32.mrb[0].mxu0
        %v664 = vadd.f32 0.0, %v663
        %v665 = vpop.f32.mrb[0].mxu0
        %666 = vmatprep.mubr.f32.mxu0 0.0
        %667 = vmatmul.mubr.f32.gmra.mrb[0].mxu0 %v471
        %v668 = vpop.f32.mrb[0].mxu0
        %v669 = vadd.f32 0.0, %v668
        %v670 = vpop.f32.mrb[0].mxu0
        %671 = vmatprep.mubr.f32.mxu0 0.0
        %672 = vmatmul.mubr.f32.gmra.mrb[0].mxu0 %v473
        %v673 = vpop.f32.mrb[0].mxu0
        %v674 = vadd.f32 0.0, %v673
        %v675 = vpop.f32.mrb[0].mxu0
        %676 = vmatprep.mubr.f32.mxu0 0.0
        %677 = vmatmul.mubr.f32.gmra.mrb[0].mxu0 %v475
        %v678 = vpop.f32.mrb[0].mxu0
        %v679 = vadd.f32 0.0, %v678
        %v680 = vpop.f32.mrb[0].mxu0
        %681 = vmatprep.mubr.f32.mxu0 0.0
        %682 = vmatmul.mubr.f32.gmra.mrb[0].mxu0 %v477
        %v683 = vpop.f32.mrb[0].mxu0
        %v684 = vadd.f32 0.0, %v683
        %v685 = vpop.f32.mrb[0].mxu0
        %686 = vmatprep.mubr.f32.mxu0 0.0
        %687 = vmatmul.mubr.f32.gmra.mrb[0].mxu0 %v479
        %v688 = vpop.f32.mrb[0].mxu0
        %v689 = vadd.f32 0.0, %v688
        %v690 = vpop.f32.mrb[0].mxu0
        %691 = vmatprep.mubr.f32.mxu0 0.0
        %692 = vmatmul.mubr.f32.gmra.mrb[0].mxu0 %v590
        %v693 = vpop.f32.mrb[0].mxu0
        %v694 = vadd.f32 0.0, %v693
        %v695 = vpop.f32.mrb[0].mxu0
        %696 = vdwg.mxu0
        %v697 = vadd.f32 %v548, %v659
        %v698 = vadd.f32 %v553, %v664
        %v699 = vadd.f32 %v558, %v669
        %v700 = vadd.f32 %v563, %v674
        %v701 = vadd.f32 %v568, %v679
        %v702 = vadd.f32 %v573, %v684
        %v703 = vadd.f32 %v578, %v689
        %v704 = vadd.f32 %v583, %v694
        %v706 = vrot.slane %v295, 1
        %v707 = vrot.slane %v296, 1
        %v708 = vsel %vm315, %v706, %v707
        %s709 = scalar_lea.vmem %s2, 48
        %v710 = vld [vmem:[%s709] sm:$0xff]
        %v711 = vld [vmem:[%s709 + $0x8] sm:$0xff]
        %v712 = vsel %vm343, %v708, 0
        %714 = vmatprep.subr.mxu0 0.0
        %715 = vmatpush1.msra.mxu0 %v710
        %716 = vmatprep.subr.mxu0 0.0
        %717 = vmatpush1.msra.mxu0 %v711
        %718 = vmatprep.subr.mxu0 0.0
        %719 = vmatpush1.msra.mxu0 0.0
        %720 = vmatprep.subr.mxu0 0.0
        %721 = vmatpush1.msra.mxu0 0.0
        %722 = vmatprep.subr.mxu0 0.0
        %723 = vmatpush1.msra.mxu0 0.0
        %724 = vmatprep.subr.mxu0 0.0
        %725 = vmatpush1.msra.mxu0 0.0
        %726 = vmatprep.subr.mxu0 0.0
        %727 = vmatpush1.msra.mxu0 0.0
        %728 = vmatprep.subr.mxu0 0.0
        %729 = vmatpush1.msra.mxu0 0.0
        %730 = vmatprep.subr.mxu0 0.0
        %731 = vmatpush1.msra.mxu0 0.0
        %732 = vmatprep.subr.mxu0 0.0
        %733 = vmatpush1.msra.mxu0 0.0
        %734 = vmatprep.subr.mxu0 0.0
        %735 = vmatpush1.msra.mxu0 0.0
        %736 = vmatprep.subr.mxu0 0.0
        %737 = vmatpush1.msra.mxu0 0.0
        %738 = vmatprep.subr.mxu0 0.0
        %739 = vmatpush1.msra.mxu0 0.0
        %740 = vmatprep.subr.mxu0 0.0
        %741 = vmatpush1.msra.mxu0 0.0
        %742 = vmatprep.subr.mxu0 0.0
        %743 = vmatpush1.msra.mxu0 0.0
        %744 = vmatprep.subr.mxu0 0.0
        %745 = vmatpush1.msra.mxu0 0.0
        %746 = vmatprep.subr.mxu0 0.0
        %747 = vmatpush1.msra.mxu0 0.0
        %748 = vmatprep.subr.mxu0 0.0
        %749 = vmatpush1.msra.mxu0 0.0
        %750 = vmatprep.subr.mxu0 0.0
        %751 = vmatpush1.msra.mxu0 0.0
        %752 = vmatprep.subr.mxu0 0.0
        %753 = vmatpush1.msra.mxu0 0.0
        %754 = vmatprep.subr.mxu0 0.0
        %755 = vmatpush1.msra.mxu0 0.0
        %756 = vmatprep.subr.mxu0 0.0
        %757 = vmatpush1.msra.mxu0 0.0
        %758 = vmatprep.subr.mxu0 0.0
        %759 = vmatpush1.msra.mxu0 0.0
        %760 = vmatprep.subr.mxu0 0.0
        %761 = vmatpush1.msra.mxu0 0.0
        %762 = vmatprep.subr.mxu0 0.0
        %763 = vmatpush1.msra.mxu0 0.0
        %764 = vmatprep.subr.mxu0 0.0
        %765 = vmatpush1.msra.mxu0 0.0
        %766 = vmatprep.subr.mxu0 0.0
        %767 = vmatpush1.msra.mxu0 0.0
        %768 = vmatprep.subr.mxu0 0.0
        %769 = vmatpush1.msra.mxu0 0.0
        %770 = vmatprep.subr.mxu0 0.0
        %771 = vmatpush1.msra.mxu0 0.0
        %772 = vmatprep.subr.mxu0 0.0
        %773 = vmatpush1.msra.mxu0 0.0
        %774 = vmatprep.subr.mxu0 0.0
        %775 = vmatpush1.msra.mxu0 0.0
        %776 = vmatprep.subr.mxu0 0.0
        %777 = vmatpush1.msra.mxu0 0.0
        %778 = vmatprep.mubr.f32.mxu0 0.0
        %779 = vmatmul.mubr.f32.gmra.mrb[0].mxu0 %v346
        %v780 = vpop.f32.mrb[0].mxu0
        %v781 = vadd.f32 0.0, %v780
        %v782 = vpop.f32.mrb[0].mxu0
        %783 = vmatprep.mubr.f32.mxu0 0.0
        %784 = vmatmul.mubr.f32.gmra.mrb[0].mxu0 %v348
        %v785 = vpop.f32.mrb[0].mxu0
        %v786 = vadd.f32 0.0, %v785
        %v787 = vpop.f32.mrb[0].mxu0
        %788 = vmatprep.mubr.f32.mxu0 0.0
        %789 = vmatmul.mubr.f32.gmra.mrb[0].mxu0 %v350
        %v790 = vpop.f32.mrb[0].mxu0
        %v791 = vadd.f32 0.0, %v790
        %v792 = vpop.f32.mrb[0].mxu0
        %793 = vmatprep.mubr.f32.mxu0 0.0
        %794 = vmatmul.mubr.f32.gmra.mrb[0].mxu0 %v352
        %v795 = vpop.f32.mrb[0].mxu0
        %v796 = vadd.f32 0.0, %v795
        %v797 = vpop.f32.mrb[0].mxu0
        %798 = vmatprep.mubr.f32.mxu0 0.0
        %799 = vmatmul.mubr.f32.gmra.mrb[0].mxu0 %v354
        %v800 = vpop.f32.mrb[0].mxu0
        %v801 = vadd.f32 0.0, %v800
        %v802 = vpop.f32.mrb[0].mxu0
        %803 = vmatprep.mubr.f32.mxu0 0.0
        %804 = vmatmul.mubr.f32.gmra.mrb[0].mxu0 %v356
        %v805 = vpop.f32.mrb[0].mxu0
        %v806 = vadd.f32 0.0, %v805
        %v807 = vpop.f32.mrb[0].mxu0
        %808 = vmatprep.mubr.f32.mxu0 0.0
        %809 = vmatmul.mubr.f32.gmra.mrb[0].mxu0 %v358
        %v810 = vpop.f32.mrb[0].mxu0
        %v811 = vadd.f32 0.0, %v810
        %v812 = vpop.f32.mrb[0].mxu0
        %813 = vmatprep.mubr.f32.mxu0 0.0
        %814 = vmatmul.mubr.f32.gmra.mrb[0].mxu0 %v712
        %v815 = vpop.f32.mrb[0].mxu0
        %v816 = vadd.f32 0.0, %v815
        %v817 = vpop.f32.mrb[0].mxu0
        %818 = vdwg.mxu0
        %v819 = vadd.f32 %v697, %v781
        %v820 = vadd.f32 %v698, %v786
        %v821 = vadd.f32 %v699, %v791
        %v822 = vadd.f32 %v700, %v796
        %v823 = vadd.f32 %v701, %v801
        %v824 = vadd.f32 %v702, %v806
        %v825 = vadd.f32 %v703, %v811
        %v826 = vadd.f32 %v704, %v816
        %v827 = vld [vmem:[#allocation2] sm:$0x1]
        %v828 = vadd.f32 %v819, %v820
        %v829 = vadd.f32 %v828, %v821
        %v830 = vadd.f32 %v829, %v822
        %v831 = vadd.f32 %v830, %v823
        %v832 = vadd.f32 %v831, %v824
        %v833 = vadd.f32 %v832, %v825
        %v834 = vadd.f32 %v833, %v826
        %v835 = vrot.slane %v834, 4
        %v836 = vadd.f32 %v834, %v835
        %v837 = vrot.slane %v836, 2
        %v838 = vadd.f32 %v836, %v837
        %v839 = vrot.slane %v838, 1
        %v840 = vadd.f32 %v838, %v839
        %v841 = vadd.f32 %v827, %v840
        %842 = vst [vmem:[#allocation2] sm:$0x1] %v841
        %v843 = vld [vmem:[#allocation3] sm:$0x1]
        %v844 = vmul.f32 %v819, %v819
        %v845 = vmul.f32 %v820, %v820
        %v846 = vmul.f32 %v821, %v821
        %v847 = vmul.f32 %v822, %v822
        %v848 = vmul.f32 %v823, %v823
        %v849 = vmul.f32 %v824, %v824
        %v850 = vmul.f32 %v825, %v825
        %v851 = vmul.f32 %v826, %v826
        %v852 = vadd.f32 %v844, %v845
        %v853 = vadd.f32 %v852, %v846
        %v854 = vadd.f32 %v853, %v847
        %v855 = vadd.f32 %v854, %v848
        %v856 = vadd.f32 %v855, %v849
        %v857 = vadd.f32 %v856, %v850
        %v858 = vadd.f32 %v857, %v851
        %v859 = vrot.slane %v858, 4
        %v860 = vadd.f32 %v858, %v859
        %v861 = vrot.slane %v860, 2
        %v862 = vadd.f32 %v860, %v861
        %v863 = vrot.slane %v862, 1
        %v864 = vadd.f32 %v862, %v863
        %v865 = vadd.f32 %v843, %v864
        %866 = vst [vmem:[#allocation3] sm:$0x1] %v865
        %s867 = smul.u32 %s22, 64
        %s868 = scalar_lea.vmem %s238, %s867 [#allocation4]
        %869 = vst [vmem:[%s868] sm:$0xff] %v819
        %870 = vst [vmem:[%s868 + $0x8] sm:$0xff] %v820
        %871 = vst [vmem:[%s868 + $0x10] sm:$0xff] %v821
        %872 = vst [vmem:[%s868 + $0x18] sm:$0xff] %v822
        %873 = vst [vmem:[%s868 + $0x20] sm:$0xff] %v823
        %874 = vst [vmem:[%s868 + $0x28] sm:$0xff] %v824
        %875 = vst [vmem:[%s868 + $0x30] sm:$0xff] %v825
        %876 = vst [vmem:[%s868 + $0x38] sm:$0xff] %v826
        // Predicated region
        $region37: #{tpu_custom_call.1} parent=31 // pred_check
          %p877 = pneg %p273
        $region38: #{tpu_custom_call.1} parent=31 // pred_check_branch
          %879 = sbr.rel (%p877) target = $region40
        $region39: #{tpu_custom_call.1} parent=31 // pred_region
          %v880 = vld [vmem:[#allocation2] sm:$0x1]
          %v881 = vrcp.pop 64.0
          %v882 = vmul.f32 %v880, %v881
          %v883 = vld [vmem:[#allocation3] sm:$0x1]
          %v884 = vmul.f32 %v883, %v881
          %v885 = vmul.f32 %v882, %v882
          %v886 = vsub.f32 %v884, %v885
          %v887 = vmax.f32 %v886, 0.0
          %v888 = vadd.f32 %v887, 1e-05
          %v889 = vrsqrt.pop %v888
          %v890 = vld [vmem:[%s238] sm:$0xff]
          %v891 = vld [vmem:[%s238 + $0x8] sm:$0xff]
          %v892 = vld [vmem:[%s238 + $0x10] sm:$0xff]
          %v893 = vld [vmem:[%s238 + $0x18] sm:$0xff]
          %v894 = vld [vmem:[%s238 + $0x20] sm:$0xff]
          %v895 = vld [vmem:[%s238 + $0x28] sm:$0xff]
          %v896 = vld [vmem:[%s238 + $0x30] sm:$0xff]
          %v897 = vld [vmem:[%s238 + $0x38] sm:$0xff]
          %v899 = vlaneseq
          %v900 = vshrl.u32 %v899, 7
          %v901 = vsub.s32 0, %v900
          %v902 = vrot.slane %v882, %v901
          %v904 = vsub.f32 %v890, %v902
          %v905 = vsub.f32 %v891, %v902
          %v906 = vsub.f32 %v892, %v902
          %v907 = vsub.f32 %v893, %v902
          %v908 = vsub.f32 %v894, %v902
          %v909 = vsub.f32 %v895, %v902
          %v910 = vsub.f32 %v896, %v902
          %v911 = vsub.f32 %v897, %v902
          %v913 = vlaneseq
          %v914 = vshrl.u32 %v913, 7
          %v915 = vsub.s32 0, %v914
          %v916 = vrot.slane %v889, %v915
          %v918 = vmul.f32 %v904, %v916
          %v919 = vmul.f32 %v905, %v916
          %v920 = vmul.f32 %v906, %v916
          %v921 = vmul.f32 %v907, %v916
          %v922 = vmul.f32 %v908, %v916
          %v923 = vmul.f32 %v909, %v916
          %v924 = vmul.f32 %v910, %v916
          %v925 = vmul.f32 %v911, %v916
          %vm926 = vcmp.ge.f32.partialorder %v918, 0.0
          %vm927 = vcmp.ge.f32.partialorder %v919, 0.0
          %vm928 = vcmp.ge.f32.partialorder %v920, 0.0
          %vm929 = vcmp.ge.f32.partialorder %v921, 0.0
          %vm930 = vcmp.ge.f32.partialorder %v922, 0.0
          %vm931 = vcmp.ge.f32.partialorder %v923, 0.0
          %vm932 = vcmp.ge.f32.partialorder %v924, 0.0
          %vm933 = vcmp.ge.f32.partialorder %v925, 0.0
          %v934 = vmul.f32 %v918, 0.2
          %v935 = vmul.f32 %v919, 0.2
          %v936 = vmul.f32 %v920, 0.2
          %v937 = vmul.f32 %v921, 0.2
          %v938 = vmul.f32 %v922, 0.2
          %v939 = vmul.f32 %v923, 0.2
          %v940 = vmul.f32 %v924, 0.2
          %v941 = vmul.f32 %v925, 0.2
          %v942 = vsel %vm926, %v918, %v934
          %v943 = vsel %vm927, %v919, %v935
          %v944 = vsel %vm928, %v920, %v936
          %v945 = vsel %vm929, %v921, %v937
          %v946 = vsel %vm930, %v922, %v938
          %v947 = vsel %vm931, %v923, %v939
          %v948 = vsel %vm932, %v924, %v940
          %v949 = vsel %vm933, %v925, %v941
          %950 = vst [vmem:[%s238] sm:$0xff] %v942
          %951 = vst [vmem:[%s238 + $0x8] sm:$0xff] %v943
          %952 = vst [vmem:[%s238 + $0x10] sm:$0xff] %v944
          %953 = vst [vmem:[%s238 + $0x18] sm:$0xff] %v945
          %954 = vst [vmem:[%s238 + $0x20] sm:$0xff] %v946
          %955 = vst [vmem:[%s238 + $0x28] sm:$0xff] %v947
          %956 = vst [vmem:[%s238 + $0x30] sm:$0xff] %v948
          %957 = vst [vmem:[%s238 + $0x38] sm:$0xff] %v949
        $region40: #{tpu_custom_call.1} parent=31 // pred_fallthru
          _
        %s958 = sand.u32 %s118, 1
        %s959 = scalar_lea.sflag [#allocation5], %s958
        %s960 = sand.u32 %s118, 1
        %s961 = smul.addr %s960, 64
        %s962 = scalar_lea.vmem [#allocation4], %s961
        // Predicated region
        $region41: #{tpu_custom_call.1} parent=31 // pred_check
          %p963 = pneg %p128
        $region42: #{tpu_custom_call.1} parent=31 // pred_check_branch
          %965 = sbr.rel (%p963) target = $region44
        $region43: #{tpu_custom_call.1} parent=31 // pred_region
          %s967 = ssub.s32 1024, 1024
          %968 = vsyncadd %s959, %s967
          %s969 = smul.addr %s21, 8
          %s970 = smul.addr %s969, 128
          %s971 = scalar_lea.hbm %s3, %s970
          %s972 = sshll.u32 %s962, 4
          %s973 = int_to_ptr.vmem [resolvable:$true] %s972
          %978 = dma.vmem_to_hbm [thread:$0]  %s973, 1024, %s971, %s959, 128, 128, 8
        $region44: #{tpu_custom_call.1} parent=31 // pred_fallthru
          _
      $region32: #{tpu_custom_call.1} parent=5 // pred_fallthru
        _
      %p979 = scmp.le.s32.totalorder 2, %s12
      // Predicated region
      $region45: #{tpu_custom_call.1} parent=5 // pred_check
        %p980 = pneg %p979
      $region46: #{tpu_custom_call.1} parent=5 // pred_check_branch
        %982 = sbr.rel (%p980) target = $region48
      $region47: #{tpu_custom_call.1} parent=5 // pred_region
        %s983 = ssub.s32 %s12, 2
        // Predicated region
        $region49: #{tpu_custom_call.1} parent=47 // pred_check
          %p984 = pneg %p134
        $region50: #{tpu_custom_call.1} parent=47 // pred_check_branch
          %986 = sbr.rel (%p984) target = $region52
        $region51: #{tpu_custom_call.1} parent=47 // pred_region
          %s987 = sand.u32 %s119, 1
          %s988 = scalar_lea.sflag [#allocation5], %s987
          %s989 = sand.u32 %s119, 1
          %s990 = smul.addr %s989, 64
          %s991 = scalar_lea.vmem [#allocation4], %s990
          %992 = dma.done %s988, 1024
        $region52: #{tpu_custom_call.1} parent=47 // pred_fallthru
          _
      $region48: #{tpu_custom_call.1} parent=5 // pred_fallthru
        _
    $region6: #{tpu_custom_call.1} parent=1 // loop_footer
      %s16 = sadd.s32 1, %s12
    $region7: #{tpu_custom_call.1} parent=1 // loop_footer_branch
      %11 = sbr.rel target = $region3
    $region8: #{tpu_custom_call.1} parent=1 // loop_exit
      _
    %993 = vsyncpa [#allocation5], 1
    %s994 = scalar_lea.sflag [#allocation5], 1
    %995 = vsyncpa %s994, 1

</llo_original>
